<compile_context>
chip_gen: v7x
topology: tpu7x:2x2x1
jax: 0.10.0
libtpu: 0.0.40
codegen_flags: <defaults>
</compile_context>

<pallas_src>
import functools

import jax
import jax.numpy as jnp
from jax.experimental import pallas as pl
from jax.experimental.pallas import tpu as pltpu


def _round_up(x, m):
    return ((x + m - 1) // m) * m


def _default_act_dtype():
    """bf16 activation math on v6e/v7x (bf16 VPU/EUP); f32 on v5e (no bf16 VPU/EUP)."""
    try:
        kind = jax.devices()[0].device_kind.lower()
    except Exception:
        kind = ""
    return jnp.float32 if "v5" in kind else jnp.bfloat16


def dqn_kernel(x_ref, w1_ref, b1_ref, w2_ref, b2_ref, o_ref, *, act_dtype):
    # Cast x to bf16 in-kernel (VPU work hidden under the input DMA), MXU matmul with
    # f32 accumulation, f32 bias add.
    x = x_ref[...].astype(jnp.bfloat16)
    h = jnp.dot(x, w1_ref[...], preferred_element_type=jnp.float32) + b1_ref[...]
    # tanh on the EUP; bf16 where the hardware supports it (v6e/v7x), else f32 (v5e).
    h = jnp.tanh(h.astype(act_dtype))
    o = jnp.dot(h.astype(jnp.bfloat16), w2_ref[...],
                preferred_element_type=jnp.float32) + b2_ref[...]
    # bf16 output store: halves the dominant HBM writeback stream.
    o_ref[...] = o.astype(o_ref.dtype)


def prepare_params(w1, b1, w2, b2):
    """One-time parameter padding/casting (hoisted out of the per-call forward path).

    w1: [in, hidden], b1: [1, hidden], w2: [hidden, n_actions], b2: [1, n_actions].
    Weights are stored transposed vs. PyTorch ([in, out]) so the kernel does x @ W.
    Hidden/output widths are zero-padded to 128-lane multiples (exact: padded b1 is 0,
    tanh(0)=0, padded w2 rows are 0). Weights bf16, biases f32.
    """
    in_features, hidden = w1.shape
    hidden2, n_actions = w2.shape
    assert hidden == hidden2
    H = _round_up(hidden, 128)
    A = _round_up(n_actions, 128)
    cdt = jnp.bfloat16
    w1_p = jnp.zeros((in_features, H), cdt).at[:, :hidden].set(w1.astype(cdt))
    b1_p = jnp.zeros((1, H), jnp.float32).at[:, :hidden].set(b1.astype(jnp.float32))
    w2_p = jnp.zeros((H, A), cdt).at[:hidden, :n_actions].set(w2.astype(cdt))
    b2_p = jnp.zeros((1, A), jnp.float32).at[:, :n_actions].set(b2.astype(jnp.float32))
    return w1_p, b1_p, w2_p, b2_p


def dqn_forward(x, w1_p, b1_p, w2_p, b2_p, n_actions, *,
                batch_tile=8192, act_dtype=None, jnp_fallback_batch=0):
    """x: [B, in_features] f32; padded params from prepare_params(); returns [B, n_actions] f32."""
    B, in_features = x.shape
    H = w1_p.shape[1]
    A = w2_p.shape[1]
    if act_dtype is None:
        act_dtype = _default_act_dtype()

    # Optional tiny-batch fast path (RL action selection): the pipelining machinery is
    # pure overhead at B ~ O(1..256). Disabled by default (jnp_fallback_batch=0).
    if B <= jnp_fallback_batch:
        h = jnp.tanh((jnp.dot(x.astype(jnp.bfloat16), w1_p,
                              preferred_element_type=jnp.float32) + b1_p).astype(act_dtype))
        o = jnp.dot(h.astype(jnp.bfloat16), w2_p,
                    preferred_element_type=jnp.float32) + b2_p
        return o[:, :n_actions].astype(jnp.float32)

    # Pad the batch only to the 8-row sublane granule (never a full tile of waste).
    B_pad = _round_up(B, 8)
    x_in = x if B_pad == B else jnp.zeros((B_pad, in_features), x.dtype).at[:B].set(x)

    # Batch tile: as large as possible (amortises per-step overhead), but capped so
    # moderate batches still produce >= 2 grid steps for the v7x megacore split.
    TB = min(batch_tile, B_pad)
    if B_pad >= 512 and pl.cdiv(B_pad, TB) < 2:
        TB = _round_up(pl.cdiv(B_pad, 2), 16)
    grid = (pl.cdiv(B_pad, TB),)

    out = pl.pallas_call(
        functools.partial(dqn_kernel, act_dtype=act_dtype),
        out_shape=jax.ShapeDtypeStruct((B_pad, A), jnp.bfloat16),
        grid=grid,
        in_specs=[
            # x: tiled over the batch grid, double-buffered HBM<->VMEM by Pallas.
            pl.BlockSpec((TB, in_features), lambda i: (i, 0)),
            # Weights / biases: constant index_map -> VMEM-resident across all steps.
            pl.BlockSpec((in_features, H), lambda i: (0, 0)),
            pl.BlockSpec((1, H), lambda i: (0, 0)),
            pl.BlockSpec((H, A), lambda i: (0, 0)),
            pl.BlockSpec((1, A), lambda i: (0, 0)),
        ],
        out_specs=pl.BlockSpec((TB, A), lambda i: (i, 0)),
        compiler_params=pltpu.CompilerParams(
            dimension_semantics=("parallel",),  # v7x: split the batch over 2 TCs
        ),
    )(x_in, w1_p, b1_p, w2_p, b2_p)

    # Drop batch / action-lane padding; return f32 like the PyTorch module.
    return out[:B, :n_actions].astype(jnp.float32)


def init_dqn_params(key, in_features, n_actions, hidden=64):
    """torch.nn.Linear-style init (uniform +/- 1/sqrt(fan_in)); weights stored [in, out]."""
    k1, k2, k3, k4 = jax.random.split(key, 4)
    bound1 = 1.0 / jnp.sqrt(jnp.float32(in_features))
    bound2 = 1.0 / jnp.sqrt(jnp.float32(hidden))
    w1 = jax.random.uniform(k1, (in_features, hidden), jnp.float32, -bound1, bound1)
    b1 = jax.random.uniform(k2, (1, hidden), jnp.float32, -bound1, bound1)
    w2 = jax.random.uniform(k3, (hidden, n_actions), jnp.float32, -bound2, bound2)
    b2 = jax.random.uniform(k4, (1, n_actions), jnp.float32, -bound2, bound2)
    return w1, b1, w2, b2


# TODO(synk): MSELoss, RMSprop, and checkpoint save/load from the PyTorch module are
# training/IO machinery, not part of the forward pass, so they are not translated.

if __name__ == "__main__":
    key = jax.random.PRNGKey(0)
    kx, kx2, kp = jax.random.split(key, 3)

    batch = 8
    in_features = 16
    n_actions = 4
    hidden = 64

    w1, b1, w2, b2 = init_dqn_params(kp, in_features, n_actions, hidden)
    w1_p, b1_p, w2_p, b2_p = prepare_params(w1, b1, w2, b2)  # one-time, outside forward

    def ref_f32(xv):
        return jnp.tanh(xv @ w1 + b1) @ w2 + b2

    # Small (action-selection sized) batch through the Pallas kernel.
    x = jax.random.normal(kx, (batch, in_features), jnp.float32)
    out = dqn_forward(x, w1_p, b1_p, w2_p, b2_p, n_actions)
    out = jax.block_until_ready(out)
    assert out.shape == (batch, n_actions)
    # Loose tolerance: bf16 matmuls/tanh/output with f32 accumulation vs pure-f32 ref.
    assert jnp.allclose(out, ref_f32(x), atol=7e-2, rtol=7e-2), "small-batch mismatch"

    # Larger batch to exercise the multi-step grid (>= 2 steps -> megacore split path).
    x_big = jax.random.normal(kx2, (1024, in_features), jnp.float32)
    out_big = jax.block_until_ready(
        dqn_forward(x_big, w1_p, b1_p, w2_p, b2_p, n_actions))
    assert out_big.shape == (1024, n_actions)
    assert jnp.allclose(out_big, ref_f32(x_big), atol=7e-2, rtol=7e-2), "big-batch mismatch"

    print("KERNEL_OK")
</pallas_src>

<mosaic_0001>
module attributes {stable_mosaic.version = 11 : i64} {
  func.func @dqn_kernel(%arg0: i32, %arg1: memref<8x16xf32, #tpu.memory_space<vmem>>, %arg2: memref<16x128xbf16, #tpu.memory_space<vmem>>, %arg3: memref<1x128xf32, #tpu.memory_space<vmem>>, %arg4: memref<128x128xbf16, #tpu.memory_space<vmem>>, %arg5: memref<1x128xf32, #tpu.memory_space<vmem>>, %arg6: memref<8x128xbf16, #tpu.memory_space<vmem>>) attributes {dimension_semantics = [#tpu.dimension_semantics<parallel>], iteration_bounds = array<i64: 1>, scalar_prefetch = 0 : i64, scratch_operands = 0 : i64, tpu.core_type = #tpu.core_type<tc>, window_params = [{transform_indices = @transform_0, window_bounds = array<i64: 8, 16>}, {pipeline_mode = #tpu.pipeline_mode<synchronous>, transform_indices = @transform_1, window_bounds = array<i64: 16, 128>}, {pipeline_mode = #tpu.pipeline_mode<synchronous>, transform_indices = @transform_2, window_bounds = array<i64: 1, 128>}, {pipeline_mode = #tpu.pipeline_mode<synchronous>, transform_indices = @transform_3, window_bounds = array<i64: 128, 128>}, {pipeline_mode = #tpu.pipeline_mode<synchronous>, transform_indices = @transform_4, window_bounds = array<i64: 1, 128>}, {transform_indices = @transform_5, window_bounds = array<i64: 8, 128>}]} {
    %c0 = arith.constant 0 : index
    %c0_0 = arith.constant 0 : index
    %0 = vector.load %arg1[%c0, %c0_0] : memref<8x16xf32, #tpu.memory_space<vmem>>, vector<8x16xf32>
    %1 = arith.truncf %0 : vector<8x16xf32> to vector<8x16xbf16>
    %c0_1 = arith.constant 0 : index
    %c0_2 = arith.constant 0 : index
    %2 = vector.load %arg2[%c0_1, %c0_2] : memref<16x128xbf16, #tpu.memory_space<vmem>>, vector<16x128xbf16>
    %cst = arith.constant dense<0.000000e+00> : vector<8x128xf32>
    %3 = tpu.matmul %1, %2, %cst {dimension_numbers = #tpu.dot_dimension_numbers<[1], [0], [0], [1], [0, 0, 1, 1], [], []>} : vector<8x16xbf16>, vector<16x128xbf16>, vector<8x128xf32> -> vector<8x128xf32>
    %c0_3 = arith.constant 0 : index
    %c0_4 = arith.constant 0 : index
    %4 = vector.load %arg3[%c0_3, %c0_4] : memref<1x128xf32, #tpu.memory_space<vmem>>, vector<1x128xf32>
    %5 = vector.broadcast %4 : vector<1x128xf32> to vector<8x128xf32>
    %6 = arith.addf %3, %5 : vector<8x128xf32>
    %7 = arith.truncf %6 : vector<8x128xf32> to vector<8x128xbf16>
    %8 = math.tanh %7 : vector<8x128xbf16>
    %c0_5 = arith.constant 0 : index
    %c0_6 = arith.constant 0 : index
    %9 = vector.load %arg4[%c0_5, %c0_6] : memref<128x128xbf16, #tpu.memory_space<vmem>>, vector<128x128xbf16>
    %cst_7 = arith.constant dense<0.000000e+00> : vector<8x128xf32>
    %10 = tpu.matmul %8, %9, %cst_7 {dimension_numbers = #tpu.dot_dimension_numbers<[1], [0], [0], [1], [0, 0, 1, 1], [], []>} : vector<8x128xbf16>, vector<128x128xbf16>, vector<8x128xf32> -> vector<8x128xf32>
    %c0_8 = arith.constant 0 : index
    %c0_9 = arith.constant 0 : index
    %11 = vector.load %arg5[%c0_8, %c0_9] : memref<1x128xf32, #tpu.memory_space<vmem>>, vector<1x128xf32>
    %12 = vector.broadcast %11 : vector<1x128xf32> to vector<8x128xf32>
    %13 = arith.addf %10, %12 : vector<8x128xf32>
    %14 = arith.truncf %13 : vector<8x128xf32> to vector<8x128xbf16>
    %c0_10 = arith.constant 0 : index
    %c0_11 = arith.constant 0 : index
    %15 = vector.load %arg6[%c0_10, %c0_11] : memref<8x128xbf16, #tpu.memory_space<vmem>>, vector<8x128xbf16>
    tpu.vector_store %arg6[%c0_10, %c0_11], %14 {strides = array<i32>} : memref<8x128xbf16, #tpu.memory_space<vmem>>, vector<8x128xbf16>,
    return
  }
  func.func @transform_0(%arg0: i32) -> (i32, i32) {
    %c0_i32 = arith.constant 0 : i32
    %c0_i32_0 = arith.constant 0 : i32
    return %arg0, %c0_i32 : i32, i32
  }
  func.func @transform_1(%arg0: i32) -> (i32, i32) {
    %c0_i32 = arith.constant 0 : i32
    %c0_i32_0 = arith.constant 0 : i32
    %c0_i32_1 = arith.constant 0 : i32
    return %c0_i32, %c0_i32_0 : i32, i32
  }
  func.func @transform_2(%arg0: i32) -> (i32, i32) {
    %c0_i32 = arith.constant 0 : i32
    %c0_i32_0 = arith.constant 0 : i32
    %c0_i32_1 = arith.constant 0 : i32
    return %c0_i32, %c0_i32_0 : i32, i32
  }
  func.func @transform_3(%arg0: i32) -> (i32, i32) {
    %c0_i32 = arith.constant 0 : i32
    %c0_i32_0 = arith.constant 0 : i32
    %c0_i32_1 = arith.constant 0 : i32
    return %c0_i32, %c0_i32_0 : i32, i32
  }
  func.func @transform_4(%arg0: i32) -> (i32, i32) {
    %c0_i32 = arith.constant 0 : i32
    %c0_i32_0 = arith.constant 0 : i32
    %c0_i32_1 = arith.constant 0 : i32
    return %c0_i32, %c0_i32_0 : i32, i32
  }
  func.func @transform_5(%arg0: i32) -> (i32, i32) {
    %c0_i32 = arith.constant 0 : i32
    %c0_i32_0 = arith.constant 0 : i32
    return %arg0, %c0_i32 : i32, i32
  }
}

</mosaic_0001>

<llo_original>
// kernel: tpu_custom_call.1
$region0: #{tpu_custom_call.1}
  #allocation0 [shape = 'u32[]', space=smem, size = 0x4, offset = 0x4, fixed_abs, tag = 'smem constant byte address 0x4 - core index']
  #allocation1 [shape = 'u32[144,128]{1,0:T(1,128)}', space=vmem, size = 0x12000, scoped, tag = 'internal scratch']
  %s0 = inlined_call_operand.hbm [shape: f32[8,16], index: 0, kind: input, shape index: {}]
  %s1 = inlined_call_operand.hbm [shape: bf16[16,128], index: 1, kind: input, shape index: {}]
  %s2 = inlined_call_operand.vmem [shape: f32[1,128], index: 2, kind: input, shape index: {}]
  %s3 = inlined_call_operand.hbm [shape: bf16[128,128], index: 3, kind: input, shape index: {}]
  %s4 = inlined_call_operand.vmem [shape: f32[1,128], index: 4, kind: input, shape index: {}]
  %s5 = inlined_call_operand.hbm [shape: bf16[8,128], index: 5, kind: output, shape index: {}]
  %s6 = sld [smem:[#allocation0]]
  $region42: #{tpu_custom_call.1} parent=0
    _
  %s8 = ssub.s32 1, %s6
  %s9 = scalar_select 0, %s8, %s6
  $region1: #{tpu_custom_call.1} parent=0
    #allocation2 [shape = 'u8[4096]{0}', space=vmem, size = 0x1000, scoped, tag = 'input window, operand 0, single buffered']
    #allocation3 [shape = 's32[1]{0}', space=sflag, size = 0x4, scoped, tag = 'scoped memory for tpu_custom_call.1']
    #allocation4 [shape = 's32[1]{0}', space=sflag, size = 0x4, scoped, tag = 'scoped memory for tpu_custom_call.1']
    #allocation5 [shape = 'u8[4096]{0}', space=vmem, size = 0x1000, scoped, tag = 'input window, operand 1, single buffered']
    #allocation6 [shape = 's32[1]{0}', space=sflag, size = 0x4, scoped, tag = 'scoped memory for tpu_custom_call.1']
    #allocation7 [shape = 'u8[32768]{0}', space=vmem, size = 0x8000, scoped, tag = 'input window, operand 3, single buffered']
    #allocation8 [shape = 'u8[2048]{0}', space=vmem, size = 0x800, scoped, tag = 'output window, operand 0, single buffered']
    %10 = vsyncpa [#allocation3], 0
    %11 = vsyncpa [#allocation6], 0
    %12 = vsyncpa [#allocation4], 0
    // Predicated region
    $region2: #{tpu_custom_call.1} parent=1 // pred_check
      _
    $region3: #{tpu_custom_call.1} parent=1 // pred_check_branch
      %14 = sbr.rel (0) target = $region5
    $region4: #{tpu_custom_call.1} parent=1 // pred_region
      %s16 = ssub.s32 128, 128
      %17 = vsyncadd [#allocation3], %s16
      %s19 = sshll.u32 [#allocation2], 4
      %s20 = int_to_ptr.vmem [resolvable:$true] %s19
      %22 = dma.hbm_to_vmem [thread:$0]  %s0, 128, %s20, [#allocation3]
    $region5: #{tpu_custom_call.1} parent=1 // pred_fallthru
      _
    // Predicated region
    $region6: #{tpu_custom_call.1} parent=1 // pred_check
      _
    $region7: #{tpu_custom_call.1} parent=1 // pred_check_branch
      %24 = sbr.rel (0) target = $region9
    $region8: #{tpu_custom_call.1} parent=1 // pred_region
      %s26 = ssub.s32 128, 128
      %27 = vsyncadd [#allocation6], %s26
      %s28 = sshll.u32 [#allocation5], 4
      %s29 = int_to_ptr.vmem [resolvable:$true] %s28
      %34 = dma.hbm_to_vmem [thread:$0]  %s1, 128, %s29, [#allocation6], 64, 64, 4
    $region9: #{tpu_custom_call.1} parent=1 // pred_fallthru
      _
    // Predicated region
    $region10: #{tpu_custom_call.1} parent=1 // pred_check
      _
    $region11: #{tpu_custom_call.1} parent=1 // pred_check_branch
      %36 = sbr.rel (0) target = $region13
    $region12: #{tpu_custom_call.1} parent=1 // pred_region
      _
    $region13: #{tpu_custom_call.1} parent=1 // pred_fallthru
      _
    // Predicated region
    $region14: #{tpu_custom_call.1} parent=1 // pred_check
      _
    $region15: #{tpu_custom_call.1} parent=1 // pred_check_branch
      %38 = sbr.rel (0) target = $region17
    $region16: #{tpu_custom_call.1} parent=1 // pred_region
      %s40 = ssub.s32 1024, 1024
      %41 = vsyncadd [#allocation6], %s40
      %s42 = sshll.u32 [#allocation7], 4
      %s43 = int_to_ptr.vmem [resolvable:$true] %s42
      %48 = dma.hbm_to_vmem [thread:$0]  %s3, 1024, %s43, [#allocation6], 64, 64, 4
    $region17: #{tpu_custom_call.1} parent=1 // pred_fallthru
      _
    // Predicated region
    $region18: #{tpu_custom_call.1} parent=1 // pred_check
      _
    $region19: #{tpu_custom_call.1} parent=1 // pred_check_branch
      %50 = sbr.rel (0) target = $region21
    $region20: #{tpu_custom_call.1} parent=1 // pred_region
      _
    $region21: #{tpu_custom_call.1} parent=1 // pred_fallthru
      _
    // Predicated region
    $region22: #{tpu_custom_call.1} parent=1 // pred_check
      _
    $region23: #{tpu_custom_call.1} parent=1 // pred_check_branch
      %52 = sbr.rel (0) target = $region25
    $region24: #{tpu_custom_call.1} parent=1 // pred_region
      %53 = dma.done [#allocation3], 128
    $region25: #{tpu_custom_call.1} parent=1 // pred_fallthru
      _
    // Predicated region
    $region26: #{tpu_custom_call.1} parent=1 // pred_check
      _
    $region27: #{tpu_custom_call.1} parent=1 // pred_check_branch
      %55 = sbr.rel (0) target = $region29
    $region28: #{tpu_custom_call.1} parent=1 // pred_region
      %56 = dma.done [#allocation6], 128
    $region29: #{tpu_custom_call.1} parent=1 // pred_fallthru
      _
    // Predicated region
    $region30: #{tpu_custom_call.1} parent=1 // pred_check
      _
    $region31: #{tpu_custom_call.1} parent=1 // pred_check_branch
      %58 = sbr.rel (0) target = $region33
    $region32: #{tpu_custom_call.1} parent=1 // pred_region
      %59 = dma.done [#allocation6], 1024
    $region33: #{tpu_custom_call.1} parent=1 // pred_fallthru
      _
    %v61 = vld [vmem:[#allocation2] sm:$0xff]
    %v62 = vpack.c.bf16 %v61, %v61
    %v63 = vld [vmem:[#allocation5] sm:$0xf]
    %v64 = vld [vmem:[#allocation5 + $0x4] sm:$0xf]
    %v65 = vld [vmem:[%s2] sm:$0x1]
    %v67 = vlaneseq
    %v68 = vshrl.u32 %v67, 7
    %v69 = vsub.s32 0, %v68
    %v70 = vrot.slane %v65, %v69
    %v74 = vunpack.c.l.b16 %v63
    %v75 = vunpack.c.l.b16 %v64
    %v76 = vpack.c.b16 %v75, %v74
    %vm78 = vcmask 130048
    %v80 = vsel %vm78, %v62, 0
    %82 = vmatprep.subr.bf16.mxu0 0
    %83 = vmatpush1.bf16.msra.mxu0 %v76
    %84 = vmatprep.subr.bf16.mxu0 0
    %85 = vmatpush1.bf16.msra.mxu0 0
    %86 = vmatprep.subr.bf16.mxu0 0
    %87 = vmatpush1.bf16.msra.mxu0 0
    %88 = vmatprep.subr.bf16.mxu0 0
    %89 = vmatpush1.bf16.msra.mxu0 0
    %90 = vmatprep.subr.bf16.mxu0 0
    %91 = vmatpush1.bf16.msra.mxu0 0
    %92 = vmatprep.subr.bf16.mxu0 0
    %93 = vmatpush1.bf16.msra.mxu0 0
    %94 = vmatprep.subr.bf16.mxu0 0
    %95 = vmatpush1.bf16.msra.mxu0 0
    %96 = vmatprep.subr.bf16.mxu0 0
    %97 = vmatpush1.bf16.msra.mxu0 0
    %98 = vmatprep.subr.bf16.mxu0 0
    %99 = vmatpush1.bf16.msra.mxu0 0
    %100 = vmatprep.subr.bf16.mxu0 0
    %101 = vmatpush1.bf16.msra.mxu0 0
    %102 = vmatprep.subr.bf16.mxu0 0
    %103 = vmatpush1.bf16.msra.mxu0 0
    %104 = vmatprep.subr.bf16.mxu0 0
    %105 = vmatpush1.bf16.msra.mxu0 0
    %106 = vmatprep.subr.bf16.mxu0 0
    %107 = vmatpush1.bf16.msra.mxu0 0
    %108 = vmatprep.subr.bf16.mxu0 0
    %109 = vmatpush1.bf16.msra.mxu0 0
    %110 = vmatprep.subr.bf16.mxu0 0
    %111 = vmatpush1.bf16.msra.mxu0 0
    %112 = vmatprep.subr.bf16.mxu0 0
    %113 = vmatpush1.bf16.msra.mxu0 0
    %114 = vmatprep.mubr.bf16.mxu0 0
    %115 = vmatmul.mubr.bf16.gmra.mrb[0].mxu0 %v80
    %v116 = vpop.f32.mrb[0].mxu0
    %v117 = vadd.f32 %v70, %v116
    %v118 = vpop.f32.mrb[0].mxu0
    %v119 = vpop.f32.mrb[0].mxu0
    %v120 = vpop.f32.mrb[0].mxu0
    %121 = vdwg.mxu0
    %v122 = vpack.c.bf16 %v117, %v117
    %v123 = vtanh.bf16.pop %v122
    %v124 = vld [vmem:[#allocation7] sm:$0xf]
    %v125 = vld [vmem:[#allocation7 + $0x4] sm:$0xf]
    %v126 = vld [vmem:[#allocation7 + $0x8] sm:$0xf]
    %v127 = vld [vmem:[#allocation7 + $0xc] sm:$0xf]
    %v128 = vld [vmem:[#allocation7 + $0x10] sm:$0xf]
    %v129 = vld [vmem:[#allocation7 + $0x14] sm:$0xf]
    %v130 = vld [vmem:[#allocation7 + $0x18] sm:$0xf]
    %v131 = vld [vmem:[#allocation7 + $0x1c] sm:$0xf]
    %v132 = vld [vmem:[#allocation7 + $0x20] sm:$0xf]
    %v133 = vld [vmem:[#allocation7 + $0x24] sm:$0xf]
    %v134 = vld [vmem:[#allocation7 + $0x28] sm:$0xf]
    %v135 = vld [vmem:[#allocation7 + $0x2c] sm:$0xf]
    %v136 = vld [vmem:[#allocation7 + $0x30] sm:$0xf]
    %v137 = vld [vmem:[#allocation7 + $0x34] sm:$0xf]
    %v138 = vld [vmem:[#allocation7 + $0x38] sm:$0xf]
    %v139 = vld [vmem:[#allocation7 + $0x3c] sm:$0xf]
    %v140 = vld [vmem:[%s4] sm:$0x1]
    %v142 = vlaneseq
    %v143 = vshrl.u32 %v142, 7
    %v144 = vsub.s32 0, %v143
    %v145 = vrot.slane %v140, %v144
    %v163 = vunpack.c.l.b16 %v124
    %v164 = vunpack.c.l.b16 %v125
    %v165 = vunpack.c.l.b16 %v126
    %v166 = vunpack.c.l.b16 %v127
    %v167 = vunpack.c.l.b16 %v128
    %v168 = vunpack.c.l.b16 %v129
    %v169 = vunpack.c.l.b16 %v130
    %v170 = vunpack.c.l.b16 %v131
    %v171 = vunpack.c.l.b16 %v132
    %v172 = vunpack.c.l.b16 %v133
    %v173 = vunpack.c.l.b16 %v134
    %v174 = vunpack.c.l.b16 %v135
    %v175 = vunpack.c.l.b16 %v136
    %v176 = vunpack.c.l.b16 %v137
    %v177 = vunpack.c.l.b16 %v138
    %v178 = vunpack.c.l.b16 %v139
    %v179 = vpack.c.b16 %v164, %v163
    %v180 = vpack.c.b16 %v166, %v165
    %v181 = vpack.c.b16 %v168, %v167
    %v182 = vpack.c.b16 %v170, %v169
    %v183 = vpack.c.b16 %v172, %v171
    %v184 = vpack.c.b16 %v174, %v173
    %v185 = vpack.c.b16 %v176, %v175
    %v186 = vpack.c.b16 %v178, %v177
    %195 = vmatprep.subr.bf16.mxu0 0
    %196 = vmatpush1.bf16.msra.mxu0 %v179
    %197 = vmatprep.subr.bf16.mxu0 0
    %198 = vmatpush1.bf16.msra.mxu0 %v180
    %199 = vmatprep.subr.bf16.mxu0 0
    %200 = vmatpush1.bf16.msra.mxu0 %v181
    %201 = vmatprep.subr.bf16.mxu0 0
    %202 = vmatpush1.bf16.msra.mxu0 %v182
    %203 = vmatprep.subr.bf16.mxu0 0
    %204 = vmatpush1.bf16.msra.mxu0 %v183
    %205 = vmatprep.subr.bf16.mxu0 0
    %206 = vmatpush1.bf16.msra.mxu0 %v184
    %207 = vmatprep.subr.bf16.mxu0 0
    %208 = vmatpush1.bf16.msra.mxu0 %v185
    %209 = vmatprep.subr.bf16.mxu0 0
    %210 = vmatpush1.bf16.msra.mxu0 %v186
    %211 = vmatprep.subr.bf16.mxu0 0
    %212 = vmatpush1.bf16.msra.mxu0 0
    %213 = vmatprep.subr.bf16.mxu0 0
    %214 = vmatpush1.bf16.msra.mxu0 0
    %215 = vmatprep.subr.bf16.mxu0 0
    %216 = vmatpush1.bf16.msra.mxu0 0
    %217 = vmatprep.subr.bf16.mxu0 0
    %218 = vmatpush1.bf16.msra.mxu0 0
    %219 = vmatprep.subr.bf16.mxu0 0
    %220 = vmatpush1.bf16.msra.mxu0 0
    %221 = vmatprep.subr.bf16.mxu0 0
    %222 = vmatpush1.bf16.msra.mxu0 0
    %223 = vmatprep.subr.bf16.mxu0 0
    %224 = vmatpush1.bf16.msra.mxu0 0
    %225 = vmatprep.subr.bf16.mxu0 0
    %226 = vmatpush1.bf16.msra.mxu0 0
    %227 = vmatprep.mubr.bf16.mxu0 0
    %228 = vmatmul.mubr.bf16.gmra.mrb[0].mxu0 %v123
    %v229 = vpop.f32.mrb[0].mxu0
    %v230 = vadd.f32 %v145, %v229
    %v231 = vpop.f32.mrb[0].mxu0
    %v232 = vpop.f32.mrb[0].mxu0
    %v233 = vpop.f32.mrb[0].mxu0
    %234 = vdwg.mxu0
    %v235 = vpack.c.bf16 %v230, %v230
    %236 = vst [vmem:[#allocation8] sm:$0xf] %v235
    // Predicated region
    $region34: #{tpu_custom_call.1} parent=1 // pred_check
      _
    $region35: #{tpu_custom_call.1} parent=1 // pred_check_branch
      %238 = sbr.rel (0) target = $region37
    $region36: #{tpu_custom_call.1} parent=1 // pred_region
      %s240 = ssub.s32 64, 64
      %241 = vsyncadd [#allocation4], %s240
      %s243 = sshll.u32 [#allocation8], 4
      %s244 = int_to_ptr.vmem [resolvable:$true] %s243
      %246 = dma.vmem_to_hbm [thread:$0]  %s244, 64, %s5, [#allocation4]
    $region37: #{tpu_custom_call.1} parent=1 // pred_fallthru
      _
    // Predicated region
    $region38: #{tpu_custom_call.1} parent=1 // pred_check
      _
    $region39: #{tpu_custom_call.1} parent=1 // pred_check_branch
      %248 = sbr.rel (0) target = $region41
    $region40: #{tpu_custom_call.1} parent=1 // pred_region
      %249 = dma.done [#allocation4], 64
    $region41: #{tpu_custom_call.1} parent=1 // pred_fallthru
      _
    %250 = vsyncpa [#allocation3], 1
    %251 = vsyncpa [#allocation6], 1
    %252 = vsyncpa [#allocation4], 1

</llo_original>
